<compile_context>
chip_gen: v5e
topology: v5e:2x2
jax: 0.10.0
libtpu: 0.0.40
codegen_flags: <defaults>
</compile_context>

<pallas_src>
import functools

import jax
import jax.numpy as jnp
from jax import lax
from jax.experimental import pallas as pl
from jax.experimental.pallas import tpu as pltpu

LANES = 128
SUBLANES = 8                 # f32 sublane pack
CHUNK_R = 256                # inner-loop chunk: (256, 128) f32 = 32 vregs
SINGLE_BLOCK_ROWS = 4096     # <= 2 MiB f32: one block (no pipelining needed)
MAX_TILE_R = 8192            # (8192, 128) f32 = 4 MiB per grid step


def _round_up(a, b):
    return ((a + b - 1) // b) * b


def _choose_tile_rows(r, itemsize):
    sub = SUBLANES * max(1, 4 // max(1, itemsize))   # 8 f32 / 16 bf16 / 32 int8
    r_al = _round_up(r, sub)
    if r_al <= CHUNK_R:
        return r_al                                  # tiny: one block, one chunk
    if r_al <= SINGLE_BLOCK_ROWS:
        return _round_up(r_al, CHUNK_R)              # small/mid: one block
    # Large: ~4+ blocks so the DMA pipeline overlaps and both cores are used,
    # capped at 4 MiB (f32) per block.
    return min(MAX_TILE_R, _round_up(pl.cdiv(r_al, 4), CHUNK_R))


def _fold_to_vreg(v, rows):
    """(rows, 128) f32 -> (8, 128) via a balanced add tree (pure VPU adds)."""
    parts = [v[g * SUBLANES:(g + 1) * SUBLANES, :] for g in range(rows // SUBLANES)]
    while len(parts) > 1:
        nxt = [a + b for a, b in zip(parts[0::2], parts[1::2])]
        if len(parts) % 2:
            nxt.append(parts[-1])
        parts = nxt
    return parts[0]


def _make_reduce_kernel(elem_fn, tile_r, chunk_r, steps, n_valid):
    n_chunks = tile_r // chunk_r
    unroll = n_chunks <= 8
    block_elems = tile_r * LANES

    def kernel(x_ref, o_ref, acc_ref):
        c = pl.program_id(0)
        s = pl.program_id(1)

        @pl.when(s == 0)
        def _init():
            acc_ref[...] = jnp.zeros_like(acc_ref)

        blk = c * steps + s                        # intended (pre-clamp) block index
        full = (blk + 1) * block_elems <= n_valid  # whole block in range -> no mask

        @pl.when(full)
        def _full_block():
            def body(i, carry):
                r0 = pl.multiple_of(i * chunk_r, chunk_r)
                xc = x_ref[pl.ds(r0, chunk_r), :].astype(jnp.float32)
                acc_ref[...] += _fold_to_vreg(elem_fn(xc), chunk_r)
                return carry
            lax.fori_loop(0, n_chunks, body, 0, unroll=unroll)

        @pl.when(jnp.logical_not(full))
        def _ragged_block():
            # Last (or clamped, fully out-of-range) block: mask by global element
            # index so zero-padded / out-of-bounds rows contribute exactly nothing.
            rows = lax.broadcasted_iota(jnp.int32, (chunk_r, LANES), 0)
            lanes = lax.broadcasted_iota(jnp.int32, (chunk_r, LANES), 1)
            base = blk * block_elems

            def body(i, carry):
                r0 = pl.multiple_of(i * chunk_r, chunk_r)
                xc = x_ref[pl.ds(r0, chunk_r), :].astype(jnp.float32)
                gidx = base + (i * chunk_r + rows) * LANES + lanes
                v = jnp.where(gidx < n_valid, elem_fn(xc), 0.0)
                acc_ref[...] += _fold_to_vreg(v, chunk_r)
                return carry
            lax.fori_loop(0, n_chunks, body, 0, unroll=unroll)

        @pl.when(s == pl.num_programs(1) - 1)
        def _finalize():
            o_ref[...] = acc_ref[...]

    return kernel


@functools.partial(jax.jit, static_argnums=(1, 2))
def _reduce_loss(x, elem_fn, scale):
    """scale * sum(elem_fn(x)) over all elements of x, as one Pallas kernel."""
    n = int(x.size)
    if jnp.dtype(x.dtype).itemsize > 4:
        x = x.astype(jnp.float32)          # TPU streams 32-bit (or narrower) only

    flat = jnp.reshape(x, (-1,))
    rem = n % LANES
    if rem:
        # TODO(synk): sizes that are not a multiple of 128 still pay one XLA pad
        # copy; the padded tail itself is masked exactly inside the kernel.
        flat = jnp.pad(flat, (0, LANES - rem))
    r = flat.size // LANES
    slab = jnp.reshape(flat, (r, LANES))

    tile_r = _choose_tile_rows(r, jnp.dtype(slab.dtype).itemsize)
    chunk_r = min(tile_r, CHUNK_R)
    num_blocks = pl.cdiv(r, tile_r)
    n_cores = 2 if num_blocks >= 2 else 1   # 2-TC split on v7x; sequential elsewhere
    steps = pl.cdiv(num_blocks, n_cores)

    kernel = _make_reduce_kernel(elem_fn, tile_r, chunk_r, steps, n)

    def in_index(c, s):
        # Clamp so the second core's trailing step of an odd block count still
        # reads in bounds; its contribution is masked to zero in the kernel.
        return (jnp.minimum(c * steps + s, num_blocks - 1), 0)

    partials = pl.pallas_call(
        kernel,
        out_shape=jax.ShapeDtypeStruct((n_cores * SUBLANES, LANES), jnp.float32),
        grid_spec=pltpu.PrefetchScalarGridSpec(
            num_scalar_prefetch=0,
            grid=(n_cores, steps),
            in_specs=[pl.BlockSpec((tile_r, LANES), in_index)],
            out_specs=pl.BlockSpec((SUBLANES, LANES), lambda c, s: (c, 0)),
            scratch_shapes=[pltpu.VMEM((SUBLANES, LANES), jnp.float32)],
        ),
        # TODO(synk): on v7x verify "parallel" actually shards axis 0 across the
        # two TensorCores; if not, switch that axis to pltpu.CORE_PARALLEL.
        compiler_params=pltpu.CompilerParams(
            dimension_semantics=("parallel", "arbitrary"),
            vmem_limit_bytes=32 * 1024 * 1024),
    )(slab)

    # Tiny (<= (16,128)) partial reduce + scale; fused into this jit executable.
    return jnp.sum(partials) * jnp.float32(scale)


# ------------------------- elementwise loss terms -------------------------

def _hinge_pos(x):        # min(x - 1, 0)
    return jnp.minimum(x - 1.0, 0.0)


def _hinge_neg(x):        # min(-x - 1, 0)
    return jnp.minimum(-x - 1.0, 0.0)


def _identity(x):
    return x


def _make_lsq(target):    # (x - target)^2
    def f(x):
        d = x - jnp.float32(target)
        return d * d
    return f


def _make_bce_logits(target):
    # Numerically stable BCE-with-logits per element:
    #   max(x, 0) - x * target + log(1 + exp(-|x|))
    # TODO(synk): if the bundle dump shows EUP-bound behaviour on v5e, swap the
    # log1p(exp(-|x|)) for a cheap rational softplus approximation.
    def f(x):
        return (jnp.maximum(x, 0.0) - x * jnp.float32(target)
                + jnp.log1p(jnp.exp(-jnp.abs(x))))
    return f


# ------------------------------ GANLoss API --------------------------------

class GANLoss:
    """JAX/Pallas port of the PyTorch GANLoss module (no parameters)."""

    def __init__(self, gan_mode, target_real_label=1.0, target_fake_label=0.0):
        self.real_label = float(target_real_label)
        self.fake_label = float(target_fake_label)
        self.gan_mode = gan_mode
        # Build per-target elementwise closures once so repeated calls hit the
        # jit cache (elem_fn is a static argument of _reduce_loss).
        if gan_mode == 'least_square':
            self._elem_real = _make_lsq(self.real_label)
            self._elem_fake = _make_lsq(self.fake_label)
        elif gan_mode == 'non_saturated':
            self._elem_real = _make_bce_logits(self.real_label)
            self._elem_fake = _make_bce_logits(self.fake_label)

    def __call__(self, dis_output, t_real, dis_update=True):
        if isinstance(dis_output, (list, tuple)):
            # TODO(synk): batch multi-scale discriminator outputs into a single
            # reduction kernel call (needs per-scale block weighting); each scale
            # currently runs as one fused jit dispatch.
            loss = jnp.float32(0.0)
            for dis_output_i in dis_output:
                loss = loss + self.loss(dis_output_i, t_real, dis_update)
            return loss / len(dis_output)
        return self.loss(dis_output, t_real, dis_update)

    def loss(self, dis_output, t_real, dis_update=True):
        if not dis_update:
            assert t_real, 'The target should be real when updating the generator.'
        n = dis_output.size
        if self.gan_mode == 'non_saturated':
            fn = self._elem_real if t_real else self._elem_fake
            return _reduce_loss(dis_output, fn, 1.0 / n)
        elif self.gan_mode == 'least_square':
            fn = self._elem_real if t_real else self._elem_fake
            return _reduce_loss(dis_output, fn, 0.5 / n)
        elif self.gan_mode == 'hinge':
            if dis_update:
                fn = _hinge_pos if t_real else _hinge_neg
                return _reduce_loss(dis_output, fn, -1.0 / n)
            return _reduce_loss(dis_output, _identity, -1.0 / n)
        elif self.gan_mode == 'wasserstein':
            return _reduce_loss(dis_output, _identity, (-1.0 if t_real else 1.0) / n)
        raise ValueError('Unexpected gan_mode {}'.format(self.gan_mode))


# --------------------------- pure-JAX reference -----------------------------

def _ref_loss(gan_mode, x, t_real, dis_update, real_label=1.0, fake_label=0.0):
    x = x.astype(jnp.float32)
    if gan_mode == 'hinge':
        if dis_update:
            if t_real:
                return -jnp.mean(jnp.minimum(x - 1.0, 0.0))
            return -jnp.mean(jnp.minimum(-x - 1.0, 0.0))
        return -jnp.mean(x)
    if gan_mode == 'wasserstein':
        return -jnp.mean(x) if t_real else jnp.mean(x)
    t = real_label if t_real else fake_label
    if gan_mode == 'least_square':
        return 0.5 * jnp.mean((x - t) ** 2)
    if gan_mode == 'non_saturated':
        return jnp.mean(jnp.maximum(x, 0.0) - x * t
                        + jnp.log1p(jnp.exp(-jnp.abs(x))))
    raise ValueError(gan_mode)


if __name__ == "__main__":
    key = jax.random.PRNGKey(0)
    k0, k1, k2, k3, k4 = jax.random.split(key, 5)

    # Primary discriminator output (logits), NCHW: 2048 elems -> single tiny block.
    x = jax.random.normal(k0, (2, 4, 16, 16), dtype=jnp.float32)
    # 262144 elems -> one 1 MiB block, chunked (unrolled) inner loop.
    x_big = jax.random.normal(k1, (8, 8, 64, 64), dtype=jnp.float32)
    # Unaligned size (1938) -> lane-pad + in-kernel element-index masking.
    x_odd = jax.random.normal(k2, (2, 3, 17, 19), dtype=jnp.float32)
    # 4.7M elems -> 5 blocks of (8192,128): 2-core split, masked last block and a
    # clamped fully-masked extra step on core 1 (odd block count).
    x_multi = jax.random.normal(k3, (18, 256, 1024), dtype=jnp.float32)
    # bf16 streaming path (halved HBM bytes; cast to f32 inside the kernel).
    x_bf16 = x_big.astype(jnp.bfloat16)

    cases_all = [
        ('hinge', True, True), ('hinge', False, True), ('hinge', True, False),
        ('wasserstein', True, True), ('wasserstein', False, True),
        ('least_square', True, True), ('least_square', False, True),
        ('non_saturated', True, True), ('non_saturated', False, True),
    ]
    cases_big = [('hinge', True, True), ('least_square', True, True),
                 ('non_saturated', True, True)]

    failures = []

    def run_cases(inp, cases):
        for mode, t_real, dis_update in cases:
            crit = GANLoss(mode)
            got = jax.block_until_ready(crit(inp, t_real, dis_update))
            want = _ref_loss(mode, inp, t_real, dis_update)
            if not jnp.allclose(got, want, rtol=1e-4, atol=1e-5):
                failures.append((tuple(inp.shape), str(inp.dtype), mode, t_real,
                                 dis_update, float(got), float(want)))

    run_cases(x, cases_all)
    run_cases(x_odd, cases_all)
    run_cases(x_big, cases_big)
    run_cases(x_multi, cases_big)
    run_cases(x_bf16, cases_big)

    # Multi-scale discriminator (list-of-outputs) path.
    x2 = jax.random.normal(k4, (2, 4, 8, 8), dtype=jnp.float32)
    crit = GANLoss('hinge')
    got_list = jax.block_until_ready(crit([x, x2], True, True))
    want_list = 0.5 * (_ref_loss('hinge', x, True, True)
                       + _ref_loss('hinge', x2, True, True))
    if not jnp.allclose(got_list, want_list, rtol=1e-4, atol=1e-5):
        failures.append(('list', 'f32', 'hinge', True, True,
                         float(got_list), float(want_list)))

    if failures:
        for f in failures:
            print("MISMATCH", f)
    else:
        print("KERNEL_OK")
</pallas_src>

<mosaic_0001>
module attributes {stable_mosaic.version = 11 : i64} {
  func.func @kernel(%arg0: i32, %arg1: i32, %arg2: memref<16x128xf32, #tpu.memory_space<vmem>>, %arg3: memref<8x128xf32, #tpu.memory_space<vmem>>, %arg4: memref<8x128xf32, #tpu.memory_space<vmem>>) attributes {dimension_semantics = [#tpu.dimension_semantics<parallel>, #tpu.dimension_semantics<arbitrary>], iteration_bounds = array<i64: 1, 1>, scalar_prefetch = 0 : i64, scratch_operands = 1 : i64, tpu.core_type = #tpu.core_type<tc>, window_params = [{transform_indices = @transform_0, window_bounds = array<i64: 16, 128>}, {transform_indices = @transform_1, window_bounds = array<i64: 8, 128>}]} {
    %c0_i32 = arith.constant 0 : i32
    %0 = arith.cmpi eq, %arg1, %c0_i32 : i32
    %1 = arith.extui %0 : i1 to i32
    %c0_i32_0 = arith.constant 0 : i32
    %2 = arith.cmpi ne, %1, %c0_i32_0 : i32
    scf.if %2 {
      %cst = arith.constant 0.000000e+00 : f32
      %16 = vector.broadcast %cst : f32 to vector<8x128xf32>
      %c0 = arith.constant 0 : index
      %c0_7 = arith.constant 0 : index
      %17 = vector.load %arg4[%c0, %c0_7] : memref<8x128xf32, #tpu.memory_space<vmem>>, vector<8x128xf32>
      tpu.vector_store %arg4[%c0, %c0_7], %16 {strides = array<i32>} : memref<8x128xf32, #tpu.memory_space<vmem>>, vector<8x128xf32>,
    } else {
    }
    %c1_i32 = arith.constant 1 : i32
    %3 = arith.muli %arg0, %c1_i32 : i32
    %4 = arith.addi %3, %arg1 : i32
    %c1_i32_1 = arith.constant 1 : i32
    %5 = arith.addi %4, %c1_i32_1 : i32
    %c2048_i32 = arith.constant 2048 : i32
    %6 = arith.muli %5, %c2048_i32 : i32
    %c2048_i32_2 = arith.constant 2048 : i32
    %7 = arith.cmpi sle, %6, %c2048_i32_2 : i32
    %8 = arith.extui %7 : i1 to i32
    %c0_i32_3 = arith.constant 0 : i32
    %9 = arith.cmpi ne, %8, %c0_i32_3 : i32
    scf.if %9 {
      %c0_i32_7 = arith.constant 0 : i32
      %c16_i32 = arith.constant 16 : i32
      %16 = arith.muli %c0_i32_7, %c16_i32 : i32
      %17 = tpu.assume_multiple %16, 16 : i32
      %18 = arith.index_cast %17 : i32 to index
      %c0 = arith.constant 0 : index
      %19 = vector.load %arg2[%18, %c0] : memref<16x128xf32, #tpu.memory_space<vmem>>, vector<16x128xf32>
      %c0_8 = arith.constant 0 : index
      %c0_9 = arith.constant 0 : index
      %20 = vector.load %arg4[%c0_8, %c0_9] : memref<8x128xf32, #tpu.memory_space<vmem>>, vector<8x128xf32>
      %cst = arith.constant 1.000000e+00 : f32
      %21 = vector.broadcast %cst : f32 to vector<16x128xf32>
      %22 = arith.subf %19, %21 : vector<16x128xf32>
      %cst_10 = arith.constant 0.000000e+00 : f32
      %23 = vector.broadcast %cst_10 : f32 to vector<16x128xf32>
      %24 = arith.minimumf %22, %23 : vector<16x128xf32>
      %25 = vector.extract_strided_slice %24 {offsets = [0, 0], sizes = [8, 128], strides = [1, 1]} : vector<16x128xf32> to vector<8x128xf32>
      %26 = vector.extract_strided_slice %24 {offsets = [8, 0], sizes = [8, 128], strides = [1, 1]} : vector<16x128xf32> to vector<8x128xf32>
      %27 = arith.addf %25, %26 : vector<8x128xf32>
      %28 = arith.addf %20, %27 : vector<8x128xf32>
      %c0_11 = arith.constant 0 : index
      %c0_12 = arith.constant 0 : index
      %29 = vector.load %arg4[%c0_11, %c0_12] : memref<8x128xf32, #tpu.memory_space<vmem>>, vector<8x128xf32>
      tpu.vector_store %arg4[%c0_11, %c0_12], %28 {strides = array<i32>} : memref<8x128xf32, #tpu.memory_space<vmem>>, vector<8x128xf32>,
      %c1_i32_13 = arith.constant 1 : i32
    } else {
    }
    %true = arith.constant true
    %10 = arith.xori %7, %true : i1
    %11 = arith.extui %10 : i1 to i32
    %c0_i32_4 = arith.constant 0 : i32
    %12 = arith.cmpi ne, %11, %c0_i32_4 : i32
    scf.if %12 {
      %16 = tpu.iota {dimensions = array<i32: 0>} : vector<16x128xi32>
      %17 = tpu.iota {dimensions = array<i32: 1>} : vector<16x128xi32>
      %c2048_i32_7 = arith.constant 2048 : i32
      %18 = arith.muli %4, %c2048_i32_7 : i32
      %c0_i32_8 = arith.constant 0 : i32
      %c16_i32 = arith.constant 16 : i32
      %19 = arith.muli %c0_i32_8, %c16_i32 : i32
      %20 = tpu.assume_multiple %19, 16 : i32
      %21 = arith.index_cast %20 : i32 to index
      %c0 = arith.constant 0 : index
      %22 = vector.load %arg2[%21, %c0] : memref<16x128xf32, #tpu.memory_space<vmem>>, vector<16x128xf32>
      %c16_i32_9 = arith.constant 16 : i32
      %23 = arith.muli %c0_i32_8, %c16_i32_9 : i32
      %24 = vector.broadcast %23 : i32 to vector<16x128xi32>
      %25 = arith.addi %24, %16 : vector<16x128xi32>
      %c128_i32 = arith.constant 128 : i32
      %26 = vector.broadcast %c128_i32 : i32 to vector<16x128xi32>
      %27 = arith.muli %25, %26 : vector<16x128xi32>
      %28 = vector.broadcast %18 : i32 to vector<16x128xi32>
      %29 = arith.addi %28, %27 : vector<16x128xi32>
      %30 = arith.addi %29, %17 : vector<16x128xi32>
      %c2048_i32_10 = arith.constant 2048 : i32
      %31 = vector.broadcast %c2048_i32_10 : i32 to vector<16x128xi32>
      %32 = arith.cmpi slt, %30, %31 : vector<16x128xi32>
      %cst = arith.constant 1.000000e+00 : f32
      %33 = vector.broadcast %cst : f32 to vector<16x128xf32>
      %34 = arith.subf %22, %33 : vector<16x128xf32>
      %cst_11 = arith.constant 0.000000e+00 : f32
      %35 = vector.broadcast %cst_11 : f32 to vector<16x128xf32>
      %36 = arith.minimumf %34, %35 : vector<16x128xf32>
      %cst_12 = arith.constant 0.000000e+00 : f32
      %37 = vector.broadcast %cst_12 : f32 to vector<16x128xf32>
      %38 = arith.select %32, %36, %37 : vector<16x128xi1>, vector<16x128xf32>
      %c0_13 = arith.constant 0 : index
      %c0_14 = arith.constant 0 : index
      %39 = vector.load %arg4[%c0_13, %c0_14] : memref<8x128xf32, #tpu.memory_space<vmem>>, vector<8x128xf32>
      %40 = vector.extract_strided_slice %38 {offsets = [0, 0], sizes = [8, 128], strides = [1, 1]} : vector<16x128xf32> to vector<8x128xf32>
      %41 = vector.extract_strided_slice %38 {offsets = [8, 0], sizes = [8, 128], strides = [1, 1]} : vector<16x128xf32> to vector<8x128xf32>
      %42 = arith.addf %40, %41 : vector<8x128xf32>
      %43 = arith.addf %39, %42 : vector<8x128xf32>
      %c0_15 = arith.constant 0 : index
      %c0_16 = arith.constant 0 : index
      %44 = vector.load %arg4[%c0_15, %c0_16] : memref<8x128xf32, #tpu.memory_space<vmem>>, vector<8x128xf32>
      tpu.vector_store %arg4[%c0_15, %c0_16], %43 {strides = array<i32>} : memref<8x128xf32, #tpu.memory_space<vmem>>, vector<8x128xf32>,
      %c1_i32_17 = arith.constant 1 : i32
    } else {
    }
    %c0_i32_5 = arith.constant 0 : i32
    %13 = arith.cmpi eq, %arg1, %c0_i32_5 : i32
    %14 = arith.extui %13 : i1 to i32
    %c0_i32_6 = arith.constant 0 : i32
    %15 = arith.cmpi ne, %14, %c0_i32_6 : i32
    scf.if %15 {
      %c0 = arith.constant 0 : index
      %c0_7 = arith.constant 0 : index
      %16 = vector.load %arg4[%c0, %c0_7] : memref<8x128xf32, #tpu.memory_space<vmem>>, vector<8x128xf32>
      %c0_8 = arith.constant 0 : index
      %c0_9 = arith.constant 0 : index
      %17 = vector.load %arg3[%c0_8, %c0_9] : memref<8x128xf32, #tpu.memory_space<vmem>>, vector<8x128xf32>
      tpu.vector_store %arg3[%c0_8, %c0_9], %16 {strides = array<i32>} : memref<8x128xf32, #tpu.memory_space<vmem>>, vector<8x128xf32>,
    } else {
    }
    return
  }
  func.func @transform_0(%arg0: i32, %arg1: i32) -> (i32, i32) {
    %c1_i32 = arith.constant 1 : i32
    %0 = arith.muli %arg0, %c1_i32 : i32
    %1 = arith.addi %0, %arg1 : i32
    %c0_i32 = arith.constant 0 : i32
    %2 = arith.minsi %1, %c0_i32 : i32
    %c0_i32_0 = arith.constant 0 : i32
    %c0_i32_1 = arith.constant 0 : i32
    return %2, %c0_i32_0 : i32, i32
  }
  func.func @transform_1(%arg0: i32, %arg1: i32) -> (i32, i32) {
    %c0_i32 = arith.constant 0 : i32
    %c0_i32_0 = arith.constant 0 : i32
    return %arg0, %c0_i32 : i32, i32
  }
}

</mosaic_0001>

<llo_original>
// kernel: _reduce_loss.1
$region0: #{_reduce_loss.1}
  #allocation0 [shape = 'u32[]', space=smem, size = 0x4, offset = 0x4, fixed_abs, tag = 'smem constant byte address 0x4 - core index']
  #allocation1 [shape = 'u32[72,128]{1,0:T(1,128)}', space=vmem, size = 0x9000, scoped, tag = 'internal scratch']
  #allocation2 [shape = 'f32[8,128]{1,0:T(8,128)}', space=vmem, size = 0x1000, scoped, tag = 'scratch operand']
  %s0 = inlined_call_operand.vmem [shape: f32[16,128], index: 0, kind: input, shape index: {}]
  %s1 = inlined_call_operand.vmem [shape: f32[8,128], index: 1, kind: output, shape index: {}]
  %s2 = sld [smem:[#allocation0]]
  $region30: #{_reduce_loss.1} parent=0
    _
  %s4 = ssub.s32 1, %s2
  %s5 = scalar_select 0, %s4, %s2
  // Predicated region
  $region2: #{_reduce_loss.1} parent=0 // pred_check
    _
  $region3: #{_reduce_loss.1} parent=0 // pred_check_branch
    %7 = sbr.rel (0) target = $region5
  $region4: #{_reduce_loss.1} parent=0 // pred_region
    %s8 = sadd.s32 0, 0
    %p9 = scmp.lt.s32.totalorder %s8, 0
    %s10 = scalar_select %p9, %s8, 0
    %s11 = smul.u32 2, %s10
    %p12 = scmp.lt.s32.totalorder %s11, 1
    %s13 = scalar_select %p12, %s11, 1
    %s14 = smul.addr %s13, 8
    %s15 = scalar_lea.vmem %s0, %s14
    %s16 = sadd.s32 0, 0
    %p17 = scmp.lt.s32.totalorder %s16, 0
    %s18 = scalar_select %p17, %s16, 0
    %s19 = smul.u32 2, %s18
  $region5: #{_reduce_loss.1} parent=0 // pred_fallthru
    _
  %s20 = sadd.s32 0, 0
  %p21 = scmp.lt.s32.totalorder %s20, 0
  %s22 = scalar_select %p21, %s20, 0
  %s23 = smul.u32 2, %s22
  %p24 = scmp.lt.s32.totalorder %s23, 1
  %s25 = scalar_select %p24, %s23, 1
  %s26 = smul.addr %s25, 8
  %s27 = scalar_lea.vmem %s0, %s26
  %s28 = sadd.s32 0, 0
  %p29 = scmp.lt.s32.totalorder %s28, 0
  %s30 = scalar_select %p29, %s28, 0
  %s31 = smul.u32 2, %s30
  %p32 = scmp.lt.s32.totalorder %s31, 1
  %s33 = scalar_select %p32, %s31, 1
  %s34 = smul.addr %s33, 8
  %s35 = scalar_lea.vmem %s0, %s34
  %s36 = sadd.s32 0, 0
  %p37 = scmp.lt.s32.totalorder %s36, 0
  %s38 = scalar_select %p37, %s36, 0
  %s39 = smul.u32 2, %s38
  %p40 = scmp.eq.s32.totalorder 0, 0
  // Predicated region
  $region6: #{_reduce_loss.1} parent=0 // pred_check
    %p41 = pneg %p40
  $region7: #{_reduce_loss.1} parent=0 // pred_check_branch
    %43 = sbr.rel (%p41) target = $region9
  $region8: #{_reduce_loss.1} parent=0 // pred_region
    %44 = vst [vmem:[#allocation2] sm:$0xff] 0.0
  $region9: #{_reduce_loss.1} parent=0 // pred_fallthru
    _
  %s45 = sadd.s32 0, 0
  %s46 = sadd.s32 %s45, 1
  %s47 = smul.u32 %s46, 2048
  %p48 = scmp.le.s32.totalorder %s47, 2048
  // Predicated region
  $region10: #{_reduce_loss.1} parent=0 // pred_check
    %p49 = pneg %p48
  $region11: #{_reduce_loss.1} parent=0 // pred_check_branch
    %51 = sbr.rel (%p49) target = $region13
  $region12: #{_reduce_loss.1} parent=0 // pred_region
    %v52 = vld [vmem:[%s35] sm:$0xff]
    %v53 = vld [vmem:[%s35 + $0x8] sm:$0xff]
    %v54 = vld [vmem:[#allocation2] sm:$0xff]
    %v55 = vsub.f32 %v52, 1.0
    %v56 = vsub.f32 %v53, 1.0
    %v57 = vmin.f32 %v55, 0.0
    %v58 = vmin.f32 %v56, 0.0
    %v59 = vadd.f32 %v57, %v58
    %v60 = vadd.f32 %v54, %v59
    %61 = vst [vmem:[#allocation2] sm:$0xff] %v60
  $region13: #{_reduce_loss.1} parent=0 // pred_fallthru
    _
  %p62 = scmp.gt.s32.totalorder %s47, 2048
  // Predicated region
  $region14: #{_reduce_loss.1} parent=0 // pred_check
    %p63 = pneg %p62
  $region15: #{_reduce_loss.1} parent=0 // pred_check_branch
    %65 = sbr.rel (%p63) target = $region17
  $region16: #{_reduce_loss.1} parent=0 // pred_region
    %v66 = vlaneseq
    %v67 = vshrl.u32 %v66, 7
    %v68 = vadd.s32 %v67, 8
    %v69 = vlaneseq
    %v70 = vand.u32 %v69, 127
    %s71 = smul.u32 %s45, 2048
    %v72 = vld [vmem:[%s35] sm:$0xff]
    %v73 = vld [vmem:[%s35 + $0x8] sm:$0xff]
    %v74 = vmul.u32 %v67, 128
    %v75 = vmul.u32 %v68, 128
    %v76 = vstv %s71
    %v77 = vadd.s32 %v76, %v74
    %v78 = vadd.s32 %v76, %v75
    %v79 = vadd.s32 %v77, %v70
    %v80 = vadd.s32 %v78, %v70
    %vm81 = vcmp.lt.s32.totalorder %v79, 2048
    %vm82 = vcmp.lt.s32.totalorder %v80, 2048
    %v83 = vsub.f32 %v72, 1.0
    %v84 = vsub.f32 %v73, 1.0
    %v85 = vmin.f32 %v83, 0.0
    %v86 = vmin.f32 %v84, 0.0
    %v87 = vsel %vm81, %v85, 0.0
    %v88 = vsel %vm82, %v86, 0.0
    %v89 = vld [vmem:[#allocation2] sm:$0xff]
    %v90 = vadd.f32 %v87, %v88
    %v91 = vadd.f32 %v89, %v90
    %92 = vst [vmem:[#allocation2] sm:$0xff] %v91
  $region17: #{_reduce_loss.1} parent=0 // pred_fallthru
    _
  // Predicated region
  $region18: #{_reduce_loss.1} parent=0 // pred_check
    %p93 = pneg %p40
  $region19: #{_reduce_loss.1} parent=0 // pred_check_branch
    %95 = sbr.rel (%p93) target = $region21
  $region20: #{_reduce_loss.1} parent=0 // pred_region
    %v96 = vld [vmem:[#allocation2] sm:$0xff]
    %97 = vst [vmem:[%s1] sm:$0xff] %v96
  $region21: #{_reduce_loss.1} parent=0 // pred_fallthru
    _
  // Predicated region
  $region22: #{_reduce_loss.1} parent=0 // pred_check
    _
  $region23: #{_reduce_loss.1} parent=0 // pred_check_branch
    %99 = sbr.rel (0) target = $region25
  $region24: #{_reduce_loss.1} parent=0 // pred_region
    _
  $region25: #{_reduce_loss.1} parent=0 // pred_fallthru
    _
  // Predicated region
  $region26: #{_reduce_loss.1} parent=0 // pred_check
    _
  $region27: #{_reduce_loss.1} parent=0 // pred_check_branch
    %101 = sbr.rel (0) target = $region29
  $region28: #{_reduce_loss.1} parent=0 // pred_region
    _
  $region29: #{_reduce_loss.1} parent=0 // pred_fallthru
    _

</llo_original>
